<compile_context>
chip_gen: v5e
topology: v5e:2x2
jax: 0.10.0
libtpu: 0.0.40
codegen_flags: <defaults>
</compile_context>

<pallas_src>
import jax
import jax.numpy as jnp
from jax.experimental import pallas as pl
from jax.experimental.pallas import tpu as pltpu

# ------------------------------ model sizes -------------------------------- #
VOCAB = 64            # stand-in for len(dictionary)
VOCAB_PAD = 128       # one-hot contraction dim zero-padded to MXU width
EMBED = 100           # EMBED_SIZE in the PyTorch module
HIDDEN = 8
NUM_GATES = 4
NUM_CLASSES = 2
CLS_PAD = 128         # lane-dense output store, sliced to 2 outside
B_PAD = 8             # sublane-aligned batch padding for the recurrence

BATCH = 2
SEQ = 8


# ------------------------------ Pallas kernel ------------------------------ #
def lstm_kernel(idx_ref, gate_tbl_ref, w_hh_ref, w_out_ref, b_out_ref, o_ref):
    # idx_ref     : (S*B_PAD, 1) int32   time-major token ids (batch padded to 8)
    # gate_tbl_ref: (V_pad, 4H)  f32     embed @ w_ih.T + b_ih + b_hh (pre-folded)
    # w_hh_ref    : (H, 4H)      f32
    # w_out_ref   : (H, CLS_PAD) f32     zero cols NUM_CLASSES..
    # b_out_ref   : (1, CLS_PAD) f32
    # o_ref       : (B_PAD, CLS_PAD) f32
    n = idx_ref.shape[0]
    v = gate_tbl_ref.shape[0]
    h_dim = w_hh_ref.shape[0]
    b_pad = o_ref.shape[0]
    seq = n // b_pad

    # Embedding lookup + input->gates projection + bias for EVERY timestep as a
    # single one-hot MXU matmul against the constant-folded gate table.
    # f32 one-hot row selection is exact, so this matches the f32 reference.
    ids = idx_ref[...]                                               # (N, 1)
    iota = jax.lax.broadcasted_iota(jnp.int32, (n, v), 1)
    onehot = jnp.where(iota == ids, 1.0, 0.0)                        # (N, V_pad) f32
    xg = jnp.dot(onehot, gate_tbl_ref[...],
                 preferred_element_type=jnp.float32)                 # (N, 4H)

    # Sequential recurrence; tiny (8,8)x(8,32) matmul per step, all in vregs.
    # Per-timestep slices start at sublane multiples of 8 (vreg-aligned).
    w_hh = w_hh_ref[...]
    h = jnp.zeros((b_pad, h_dim), jnp.float32)
    c = jnp.zeros((b_pad, h_dim), jnp.float32)
    for t in range(seq):                                 # static unroll, S small
        g = xg[t * b_pad:(t + 1) * b_pad, :] + jnp.dot(
            h, w_hh, preferred_element_type=jnp.float32)             # (B_PAD, 4H)
        # One EUP tanh feeds all three sigmoid gates (sigmoid in tanh form),
        # one more tanh for the cell gate.
        sg = 0.5 * (jnp.tanh(0.5 * g) + 1.0)                         # (B_PAD, 4H)
        i_g = sg[:, 0 * h_dim:1 * h_dim]
        f_g = sg[:, 1 * h_dim:2 * h_dim]
        o_g = sg[:, 3 * h_dim:4 * h_dim]
        g_g = jnp.tanh(g[:, 2 * h_dim:3 * h_dim])
        c = f_g * c + i_g * g_g
        h = o_g * jnp.tanh(c)

    # Output head on the last hidden state; lane-dense (B_PAD, 128) store.
    o_ref[...] = jnp.dot(h, w_out_ref[...],
                         preferred_element_type=jnp.float32) + b_out_ref[...]


# ------------------------------- wrapper ----------------------------------- #
def lstm_forward(tokens, kparams):
    """tokens: (B, S) int32 ids (PyTorch layout). Returns (B, NUM_CLASSES) f32."""
    b, s = tokens.shape
    # PyTorch `inputs.t()` -> time-major (S, B); pad batch to B_PAD with token 0
    # (rows are independent; padded rows are discarded below), flatten (S*B_PAD, 1).
    idx_tm = jnp.transpose(tokens).astype(jnp.int32)                 # (S, B)
    pad = jnp.zeros((s, B_PAD - b), jnp.int32)
    idx = jnp.concatenate([idx_tm, pad], axis=1).reshape(s * B_PAD, 1)
    out = pl.pallas_call(
        lstm_kernel,
        out_shape=jax.ShapeDtypeStruct((B_PAD, CLS_PAD), jnp.float32),
        in_specs=[pl.BlockSpec(memory_space=pltpu.MemorySpace.VMEM)
                  for _ in range(1 + len(kparams))],
        out_specs=pl.BlockSpec(memory_space=pltpu.MemorySpace.VMEM),
    )(idx, *kparams)
    return out[:b, :NUM_CLASSES]


# ------------------------------ parameters --------------------------------- #
def init_params(key):
    """Deterministic synthetic params in PyTorch layout (all f32)."""
    ks = jax.random.split(key, 7)
    bound = 1.0 / HIDDEN ** 0.5
    embed = jax.random.normal(ks[0], (VOCAB, EMBED), jnp.float32)
    w_ih = jax.random.uniform(ks[1], (NUM_GATES * HIDDEN, EMBED), jnp.float32, -bound, bound)
    w_hh = jax.random.uniform(ks[2], (NUM_GATES * HIDDEN, HIDDEN), jnp.float32, -bound, bound)
    b_ih = jax.random.uniform(ks[3], (NUM_GATES * HIDDEN,), jnp.float32, -bound, bound)
    b_hh = jax.random.uniform(ks[4], (NUM_GATES * HIDDEN,), jnp.float32, -bound, bound)
    w_out = jax.random.uniform(ks[5], (NUM_CLASSES, HIDDEN), jnp.float32, -bound, bound)
    b_out = jax.random.uniform(ks[6], (NUM_CLASSES,), jnp.float32, -bound, bound)
    return dict(embed=embed, w_ih=w_ih, w_hh=w_hh, b_ih=b_ih, b_hh=b_hh,
                w_out=w_out, b_out=b_out)


def pack_params(p):
    """Kernel layout: constant-fold embed @ w_ih.T + biases into one gate table,
    transpose remaining weights to (in, out), zero-pad contraction/lane dims."""
    hi = jax.lax.Precision.HIGHEST
    tbl = jnp.dot(p["embed"], p["w_ih"].T, precision=hi)             # (V, 4H) f32
    tbl = tbl + (p["b_ih"] + p["b_hh"])[None, :]
    gate_tbl = jnp.zeros((VOCAB_PAD, NUM_GATES * HIDDEN), jnp.float32).at[:VOCAB, :].set(tbl)
    w_hh_t = p["w_hh"].T                                             # (H, 4H)
    w_out_pad = jnp.zeros((HIDDEN, CLS_PAD), jnp.float32).at[:, :NUM_CLASSES].set(p["w_out"].T)
    b_out_pad = jnp.zeros((1, CLS_PAD), jnp.float32).at[0, :NUM_CLASSES].set(p["b_out"])
    return (gate_tbl, w_hh_t, w_out_pad, b_out_pad)


# ------------------------- pure-JAX reference check ------------------------ #
def reference_forward(tokens, p):
    hi = jax.lax.Precision.HIGHEST
    idx = tokens.T                                                   # inputs.t(): (S, B)
    x = p["embed"][idx]                                              # (S, B, E)
    s, b, _ = x.shape
    h = jnp.zeros((b, HIDDEN), jnp.float32)
    c = jnp.zeros((b, HIDDEN), jnp.float32)
    for t in range(s):
        g = (jnp.dot(x[t], p["w_ih"].T, precision=hi) + p["b_ih"]
             + jnp.dot(h, p["w_hh"].T, precision=hi) + p["b_hh"])
        i_g = jax.nn.sigmoid(g[:, 0 * HIDDEN:1 * HIDDEN])
        f_g = jax.nn.sigmoid(g[:, 1 * HIDDEN:2 * HIDDEN])
        g_g = jnp.tanh(g[:, 2 * HIDDEN:3 * HIDDEN])
        o_g = jax.nn.sigmoid(g[:, 3 * HIDDEN:4 * HIDDEN])
        c = f_g * c + i_g * g_g
        h = o_g * jnp.tanh(c)
    return jnp.dot(h, p["w_out"].T, precision=hi) + p["b_out"]


if __name__ == "__main__":
    key = jax.random.PRNGKey(0)
    pkey, xkey = jax.random.split(key)
    params = init_params(pkey)
    kparams = pack_params(params)
    tokens = jax.random.randint(xkey, (BATCH, SEQ), 0, VOCAB, dtype=jnp.int32)

    fwd = jax.jit(lstm_forward)
    out = jax.block_until_ready(fwd(tokens, kparams))
    assert out.shape == (BATCH, NUM_CLASSES) and out.dtype == jnp.float32

    ref = jax.block_until_ready(reference_forward(tokens, params))
    err = float(jnp.max(jnp.abs(out - ref)))
    assert jnp.allclose(out, ref, atol=2e-3, rtol=2e-3), f"mismatch vs reference, max err {err}"

    print("KERNEL_OK")
</pallas_src>

<mosaic_0001>
module attributes {stable_mosaic.version = 11 : i64} {
  func.func @lstm_kernel(%arg0: memref<64x1xi32, #tpu.memory_space<vmem>>, %arg1: memref<128x32xf32, #tpu.memory_space<vmem>>, %arg2: memref<8x32xf32, #tpu.memory_space<vmem>>, %arg3: memref<8x128xf32, #tpu.memory_space<vmem>>, %arg4: memref<1x128xf32, #tpu.memory_space<vmem>>, %arg5: memref<8x128xf32, #tpu.memory_space<vmem>>) attributes {dimension_semantics = [], scalar_prefetch = 0 : i64, scratch_operands = 0 : i64, tpu.core_type = #tpu.core_type<tc>} {
    %c0 = arith.constant 0 : index
    %c0_0 = arith.constant 0 : index
    %0 = vector.load %arg0[%c0, %c0_0] : memref<64x1xi32, #tpu.memory_space<vmem>>, vector<64x1xi32>
    %1 = tpu.iota {dimensions = array<i32: 1>} : vector<64x128xi32>
    %2 = vector.broadcast %0 : vector<64x1xi32> to vector<64x128xi32>
    %3 = arith.cmpi eq, %1, %2 : vector<64x128xi32>
    %cst = arith.constant 1.000000e+00 : f32
    %cst_1 = arith.constant 0.000000e+00 : f32
    %4 = vector.broadcast %cst : f32 to vector<64x128xf32>
    %5 = vector.broadcast %cst_1 : f32 to vector<64x128xf32>
    %6 = arith.select %3, %4, %5 : vector<64x128xi1>, vector<64x128xf32>
    %c0_2 = arith.constant 0 : index
    %c0_3 = arith.constant 0 : index
    %7 = vector.load %arg1[%c0_2, %c0_3] : memref<128x32xf32, #tpu.memory_space<vmem>>, vector<128x32xf32>
    %cst_4 = arith.constant dense<0.000000e+00> : vector<64x32xf32>
    %8 = tpu.matmul %6, %7, %cst_4 {dimension_numbers = #tpu.dot_dimension_numbers<[1], [0], [0], [1], [0, 0, 1, 1], [], []>} : vector<64x128xf32>, vector<128x32xf32>, vector<64x32xf32> -> vector<64x32xf32>
    %c0_5 = arith.constant 0 : index
    %c0_6 = arith.constant 0 : index
    %9 = vector.load %arg2[%c0_5, %c0_6] : memref<8x32xf32, #tpu.memory_space<vmem>>, vector<8x32xf32>
    %cst_7 = arith.constant 0.000000e+00 : f32
    %10 = vector.broadcast %cst_7 : f32 to vector<8x8xf32>
    %cst_8 = arith.constant 0.000000e+00 : f32
    %11 = vector.broadcast %cst_8 : f32 to vector<8x8xf32>
    %12 = vector.extract_strided_slice %8 {offsets = [0, 0], sizes = [8, 32], strides = [1, 1]} : vector<64x32xf32> to vector<8x32xf32>
    %cst_9 = arith.constant dense<0.000000e+00> : vector<8x32xf32>
    %13 = tpu.matmul %10, %9, %cst_9 {dimension_numbers = #tpu.dot_dimension_numbers<[1], [0], [0], [1], [0, 0, 1, 1], [], []>} : vector<8x8xf32>, vector<8x32xf32>, vector<8x32xf32> -> vector<8x32xf32>
    %14 = arith.addf %12, %13 : vector<8x32xf32>
    %cst_10 = arith.constant 5.000000e-01 : f32
    %15 = vector.broadcast %cst_10 : f32 to vector<8x32xf32>
    %16 = arith.mulf %15, %14 : vector<8x32xf32>
    %17 = math.tanh %16 : vector<8x32xf32>
    %cst_11 = arith.constant 1.000000e+00 : f32
    %18 = vector.broadcast %cst_11 : f32 to vector<8x32xf32>
    %19 = arith.addf %17, %18 : vector<8x32xf32>
    %cst_12 = arith.constant 5.000000e-01 : f32
    %20 = vector.broadcast %cst_12 : f32 to vector<8x32xf32>
    %21 = arith.mulf %20, %19 : vector<8x32xf32>
    %22 = vector.extract_strided_slice %21 {offsets = [0, 0], sizes = [8, 8], strides = [1, 1]} : vector<8x32xf32> to vector<8x8xf32>
    %23 = vector.extract_strided_slice %21 {offsets = [0, 8], sizes = [8, 8], strides = [1, 1]} : vector<8x32xf32> to vector<8x8xf32>
    %24 = vector.extract_strided_slice %21 {offsets = [0, 24], sizes = [8, 8], strides = [1, 1]} : vector<8x32xf32> to vector<8x8xf32>
    %25 = vector.extract_strided_slice %14 {offsets = [0, 16], sizes = [8, 8], strides = [1, 1]} : vector<8x32xf32> to vector<8x8xf32>
    %26 = math.tanh %25 : vector<8x8xf32>
    %27 = arith.mulf %23, %11 : vector<8x8xf32>
    %28 = arith.mulf %22, %26 : vector<8x8xf32>
    %29 = arith.addf %27, %28 : vector<8x8xf32>
    %30 = math.tanh %29 : vector<8x8xf32>
    %31 = arith.mulf %24, %30 : vector<8x8xf32>
    %32 = vector.extract_strided_slice %8 {offsets = [8, 0], sizes = [8, 32], strides = [1, 1]} : vector<64x32xf32> to vector<8x32xf32>
    %cst_13 = arith.constant dense<0.000000e+00> : vector<8x32xf32>
    %33 = tpu.matmul %31, %9, %cst_13 {dimension_numbers = #tpu.dot_dimension_numbers<[1], [0], [0], [1], [0, 0, 1, 1], [], []>} : vector<8x8xf32>, vector<8x32xf32>, vector<8x32xf32> -> vector<8x32xf32>
    %34 = arith.addf %32, %33 : vector<8x32xf32>
    %cst_14 = arith.constant 5.000000e-01 : f32
    %35 = vector.broadcast %cst_14 : f32 to vector<8x32xf32>
    %36 = arith.mulf %35, %34 : vector<8x32xf32>
    %37 = math.tanh %36 : vector<8x32xf32>
    %cst_15 = arith.constant 1.000000e+00 : f32
    %38 = vector.broadcast %cst_15 : f32 to vector<8x32xf32>
    %39 = arith.addf %37, %38 : vector<8x32xf32>
    %cst_16 = arith.constant 5.000000e-01 : f32
    %40 = vector.broadcast %cst_16 : f32 to vector<8x32xf32>
    %41 = arith.mulf %40, %39 : vector<8x32xf32>
    %42 = vector.extract_strided_slice %41 {offsets = [0, 0], sizes = [8, 8], strides = [1, 1]} : vector<8x32xf32> to vector<8x8xf32>
    %43 = vector.extract_strided_slice %41 {offsets = [0, 8], sizes = [8, 8], strides = [1, 1]} : vector<8x32xf32> to vector<8x8xf32>
    %44 = vector.extract_strided_slice %41 {offsets = [0, 24], sizes = [8, 8], strides = [1, 1]} : vector<8x32xf32> to vector<8x8xf32>
    %45 = vector.extract_strided_slice %34 {offsets = [0, 16], sizes = [8, 8], strides = [1, 1]} : vector<8x32xf32> to vector<8x8xf32>
    %46 = math.tanh %45 : vector<8x8xf32>
    %47 = arith.mulf %43, %29 : vector<8x8xf32>
    %48 = arith.mulf %42, %46 : vector<8x8xf32>
    %49 = arith.addf %47, %48 : vector<8x8xf32>
    %50 = math.tanh %49 : vector<8x8xf32>
    %51 = arith.mulf %44, %50 : vector<8x8xf32>
    %52 = vector.extract_strided_slice %8 {offsets = [16, 0], sizes = [8, 32], strides = [1, 1]} : vector<64x32xf32> to vector<8x32xf32>
    %cst_17 = arith.constant dense<0.000000e+00> : vector<8x32xf32>
    %53 = tpu.matmul %51, %9, %cst_17 {dimension_numbers = #tpu.dot_dimension_numbers<[1], [0], [0], [1], [0, 0, 1, 1], [], []>} : vector<8x8xf32>, vector<8x32xf32>, vector<8x32xf32> -> vector<8x32xf32>
    %54 = arith.addf %52, %53 : vector<8x32xf32>
    %cst_18 = arith.constant 5.000000e-01 : f32
    %55 = vector.broadcast %cst_18 : f32 to vector<8x32xf32>
    %56 = arith.mulf %55, %54 : vector<8x32xf32>
    %57 = math.tanh %56 : vector<8x32xf32>
    %cst_19 = arith.constant 1.000000e+00 : f32
    %58 = vector.broadcast %cst_19 : f32 to vector<8x32xf32>
    %59 = arith.addf %57, %58 : vector<8x32xf32>
    %cst_20 = arith.constant 5.000000e-01 : f32
    %60 = vector.broadcast %cst_20 : f32 to vector<8x32xf32>
    %61 = arith.mulf %60, %59 : vector<8x32xf32>
    %62 = vector.extract_strided_slice %61 {offsets = [0, 0], sizes = [8, 8], strides = [1, 1]} : vector<8x32xf32> to vector<8x8xf32>
    %63 = vector.extract_strided_slice %61 {offsets = [0, 8], sizes = [8, 8], strides = [1, 1]} : vector<8x32xf32> to vector<8x8xf32>
    %64 = vector.extract_strided_slice %61 {offsets = [0, 24], sizes = [8, 8], strides = [1, 1]} : vector<8x32xf32> to vector<8x8xf32>
    %65 = vector.extract_strided_slice %54 {offsets = [0, 16], sizes = [8, 8], strides = [1, 1]} : vector<8x32xf32> to vector<8x8xf32>
    %66 = math.tanh %65 : vector<8x8xf32>
    %67 = arith.mulf %63, %49 : vector<8x8xf32>
    %68 = arith.mulf %62, %66 : vector<8x8xf32>
    %69 = arith.addf %67, %68 : vector<8x8xf32>
    %70 = math.tanh %69 : vector<8x8xf32>
    %71 = arith.mulf %64, %70 : vector<8x8xf32>
    %72 = vector.extract_strided_slice %8 {offsets = [24, 0], sizes = [8, 32], strides = [1, 1]} : vector<64x32xf32> to vector<8x32xf32>
    %cst_21 = arith.constant dense<0.000000e+00> : vector<8x32xf32>
    %73 = tpu.matmul %71, %9, %cst_21 {dimension_numbers = #tpu.dot_dimension_numbers<[1], [0], [0], [1], [0, 0, 1, 1], [], []>} : vector<8x8xf32>, vector<8x32xf32>, vector<8x32xf32> -> vector<8x32xf32>
    %74 = arith.addf %72, %73 : vector<8x32xf32>
    %cst_22 = arith.constant 5.000000e-01 : f32
    %75 = vector.broadcast %cst_22 : f32 to vector<8x32xf32>
    %76 = arith.mulf %75, %74 : vector<8x32xf32>
    %77 = math.tanh %76 : vector<8x32xf32>
    %cst_23 = arith.constant 1.000000e+00 : f32
    %78 = vector.broadcast %cst_23 : f32 to vector<8x32xf32>
    %79 = arith.addf %77, %78 : vector<8x32xf32>
    %cst_24 = arith.constant 5.000000e-01 : f32
    %80 = vector.broadcast %cst_24 : f32 to vector<8x32xf32>
    %81 = arith.mulf %80, %79 : vector<8x32xf32>
    %82 = vector.extract_strided_slice %81 {offsets = [0, 0], sizes = [8, 8], strides = [1, 1]} : vector<8x32xf32> to vector<8x8xf32>
    %83 = vector.extract_strided_slice %81 {offsets = [0, 8], sizes = [8, 8], strides = [1, 1]} : vector<8x32xf32> to vector<8x8xf32>
    %84 = vector.extract_strided_slice %81 {offsets = [0, 24], sizes = [8, 8], strides = [1, 1]} : vector<8x32xf32> to vector<8x8xf32>
    %85 = vector.extract_strided_slice %74 {offsets = [0, 16], sizes = [8, 8], strides = [1, 1]} : vector<8x32xf32> to vector<8x8xf32>
    %86 = math.tanh %85 : vector<8x8xf32>
    %87 = arith.mulf %83, %69 : vector<8x8xf32>
    %88 = arith.mulf %82, %86 : vector<8x8xf32>
    %89 = arith.addf %87, %88 : vector<8x8xf32>
    %90 = math.tanh %89 : vector<8x8xf32>
    %91 = arith.mulf %84, %90 : vector<8x8xf32>
    %92 = vector.extract_strided_slice %8 {offsets = [32, 0], sizes = [8, 32], strides = [1, 1]} : vector<64x32xf32> to vector<8x32xf32>
    %cst_25 = arith.constant dense<0.000000e+00> : vector<8x32xf32>
    %93 = tpu.matmul %91, %9, %cst_25 {dimension_numbers = #tpu.dot_dimension_numbers<[1], [0], [0], [1], [0, 0, 1, 1], [], []>} : vector<8x8xf32>, vector<8x32xf32>, vector<8x32xf32> -> vector<8x32xf32>
    %94 = arith.addf %92, %93 : vector<8x32xf32>
    %cst_26 = arith.constant 5.000000e-01 : f32
    %95 = vector.broadcast %cst_26 : f32 to vector<8x32xf32>
    %96 = arith.mulf %95, %94 : vector<8x32xf32>
    %97 = math.tanh %96 : vector<8x32xf32>
    %cst_27 = arith.constant 1.000000e+00 : f32
    %98 = vector.broadcast %cst_27 : f32 to vector<8x32xf32>
    %99 = arith.addf %97, %98 : vector<8x32xf32>
    %cst_28 = arith.constant 5.000000e-01 : f32
    %100 = vector.broadcast %cst_28 : f32 to vector<8x32xf32>
    %101 = arith.mulf %100, %99 : vector<8x32xf32>
    %102 = vector.extract_strided_slice %101 {offsets = [0, 0], sizes = [8, 8], strides = [1, 1]} : vector<8x32xf32> to vector<8x8xf32>
    %103 = vector.extract_strided_slice %101 {offsets = [0, 8], sizes = [8, 8], strides = [1, 1]} : vector<8x32xf32> to vector<8x8xf32>
    %104 = vector.extract_strided_slice %101 {offsets = [0, 24], sizes = [8, 8], strides = [1, 1]} : vector<8x32xf32> to vector<8x8xf32>
    %105 = vector.extract_strided_slice %94 {offsets = [0, 16], sizes = [8, 8], strides = [1, 1]} : vector<8x32xf32> to vector<8x8xf32>
    %106 = math.tanh %105 : vector<8x8xf32>
    %107 = arith.mulf %103, %89 : vector<8x8xf32>
    %108 = arith.mulf %102, %106 : vector<8x8xf32>
    %109 = arith.addf %107, %108 : vector<8x8xf32>
    %110 = math.tanh %109 : vector<8x8xf32>
    %111 = arith.mulf %104, %110 : vector<8x8xf32>
    %112 = vector.extract_strided_slice %8 {offsets = [40, 0], sizes = [8, 32], strides = [1, 1]} : vector<64x32xf32> to vector<8x32xf32>
    %cst_29 = arith.constant dense<0.000000e+00> : vector<8x32xf32>
    %113 = tpu.matmul %111, %9, %cst_29 {dimension_numbers = #tpu.dot_dimension_numbers<[1], [0], [0], [1], [0, 0, 1, 1], [], []>} : vector<8x8xf32>, vector<8x32xf32>, vector<8x32xf32> -> vector<8x32xf32>
    %114 = arith.addf %112, %113 : vector<8x32xf32>
    %cst_30 = arith.constant 5.000000e-01 : f32
    %115 = vector.broadcast %cst_30 : f32 to vector<8x32xf32>
    %116 = arith.mulf %115, %114 : vector<8x32xf32>
    %117 = math.tanh %116 : vector<8x32xf32>
    %cst_31 = arith.constant 1.000000e+00 : f32
    %118 = vector.broadcast %cst_31 : f32 to vector<8x32xf32>
    %119 = arith.addf %117, %118 : vector<8x32xf32>
    %cst_32 = arith.constant 5.000000e-01 : f32
    %120 = vector.broadcast %cst_32 : f32 to vector<8x32xf32>
    %121 = arith.mulf %120, %119 : vector<8x32xf32>
    %122 = vector.extract_strided_slice %121 {offsets = [0, 0], sizes = [8, 8], strides = [1, 1]} : vector<8x32xf32> to vector<8x8xf32>
    %123 = vector.extract_strided_slice %121 {offsets = [0, 8], sizes = [8, 8], strides = [1, 1]} : vector<8x32xf32> to vector<8x8xf32>
    %124 = vector.extract_strided_slice %121 {offsets = [0, 24], sizes = [8, 8], strides = [1, 1]} : vector<8x32xf32> to vector<8x8xf32>
    %125 = vector.extract_strided_slice %114 {offsets = [0, 16], sizes = [8, 8], strides = [1, 1]} : vector<8x32xf32> to vector<8x8xf32>
    %126 = math.tanh %125 : vector<8x8xf32>
    %127 = arith.mulf %123, %109 : vector<8x8xf32>
    %128 = arith.mulf %122, %126 : vector<8x8xf32>
    %129 = arith.addf %127, %128 : vector<8x8xf32>
    %130 = math.tanh %129 : vector<8x8xf32>
    %131 = arith.mulf %124, %130 : vector<8x8xf32>
    %132 = vector.extract_strided_slice %8 {offsets = [48, 0], sizes = [8, 32], strides = [1, 1]} : vector<64x32xf32> to vector<8x32xf32>
    %cst_33 = arith.constant dense<0.000000e+00> : vector<8x32xf32>
    %133 = tpu.matmul %131, %9, %cst_33 {dimension_numbers = #tpu.dot_dimension_numbers<[1], [0], [0], [1], [0, 0, 1, 1], [], []>} : vector<8x8xf32>, vector<8x32xf32>, vector<8x32xf32> -> vector<8x32xf32>
    %134 = arith.addf %132, %133 : vector<8x32xf32>
    %cst_34 = arith.constant 5.000000e-01 : f32
    %135 = vector.broadcast %cst_34 : f32 to vector<8x32xf32>
    %136 = arith.mulf %135, %134 : vector<8x32xf32>
    %137 = math.tanh %136 : vector<8x32xf32>
    %cst_35 = arith.constant 1.000000e+00 : f32
    %138 = vector.broadcast %cst_35 : f32 to vector<8x32xf32>
    %139 = arith.addf %137, %138 : vector<8x32xf32>
    %cst_36 = arith.constant 5.000000e-01 : f32
    %140 = vector.broadcast %cst_36 : f32 to vector<8x32xf32>
    %141 = arith.mulf %140, %139 : vector<8x32xf32>
    %142 = vector.extract_strided_slice %141 {offsets = [0, 0], sizes = [8, 8], strides = [1, 1]} : vector<8x32xf32> to vector<8x8xf32>
    %143 = vector.extract_strided_slice %141 {offsets = [0, 8], sizes = [8, 8], strides = [1, 1]} : vector<8x32xf32> to vector<8x8xf32>
    %144 = vector.extract_strided_slice %141 {offsets = [0, 24], sizes = [8, 8], strides = [1, 1]} : vector<8x32xf32> to vector<8x8xf32>
    %145 = vector.extract_strided_slice %134 {offsets = [0, 16], sizes = [8, 8], strides = [1, 1]} : vector<8x32xf32> to vector<8x8xf32>
    %146 = math.tanh %145 : vector<8x8xf32>
    %147 = arith.mulf %143, %129 : vector<8x8xf32>
    %148 = arith.mulf %142, %146 : vector<8x8xf32>
    %149 = arith.addf %147, %148 : vector<8x8xf32>
    %150 = math.tanh %149 : vector<8x8xf32>
    %151 = arith.mulf %144, %150 : vector<8x8xf32>
    %152 = vector.extract_strided_slice %8 {offsets = [56, 0], sizes = [8, 32], strides = [1, 1]} : vector<64x32xf32> to vector<8x32xf32>
    %cst_37 = arith.constant dense<0.000000e+00> : vector<8x32xf32>
    %153 = tpu.matmul %151, %9, %cst_37 {dimension_numbers = #tpu.dot_dimension_numbers<[1], [0], [0], [1], [0, 0, 1, 1], [], []>} : vector<8x8xf32>, vector<8x32xf32>, vector<8x32xf32> -> vector<8x32xf32>
    %154 = arith.addf %152, %153 : vector<8x32xf32>
    %cst_38 = arith.constant 5.000000e-01 : f32
    %155 = vector.broadcast %cst_38 : f32 to vector<8x32xf32>
    %156 = arith.mulf %155, %154 : vector<8x32xf32>
    %157 = math.tanh %156 : vector<8x32xf32>
    %cst_39 = arith.constant 1.000000e+00 : f32
    %158 = vector.broadcast %cst_39 : f32 to vector<8x32xf32>
    %159 = arith.addf %157, %158 : vector<8x32xf32>
    %cst_40 = arith.constant 5.000000e-01 : f32
    %160 = vector.broadcast %cst_40 : f32 to vector<8x32xf32>
    %161 = arith.mulf %160, %159 : vector<8x32xf32>
    %162 = vector.extract_strided_slice %161 {offsets = [0, 0], sizes = [8, 8], strides = [1, 1]} : vector<8x32xf32> to vector<8x8xf32>
    %163 = vector.extract_strided_slice %161 {offsets = [0, 8], sizes = [8, 8], strides = [1, 1]} : vector<8x32xf32> to vector<8x8xf32>
    %164 = vector.extract_strided_slice %161 {offsets = [0, 24], sizes = [8, 8], strides = [1, 1]} : vector<8x32xf32> to vector<8x8xf32>
    %165 = vector.extract_strided_slice %154 {offsets = [0, 16], sizes = [8, 8], strides = [1, 1]} : vector<8x32xf32> to vector<8x8xf32>
    %166 = math.tanh %165 : vector<8x8xf32>
    %167 = arith.mulf %163, %149 : vector<8x8xf32>
    %168 = arith.mulf %162, %166 : vector<8x8xf32>
    %169 = arith.addf %167, %168 : vector<8x8xf32>
    %170 = math.tanh %169 : vector<8x8xf32>
    %171 = arith.mulf %164, %170 : vector<8x8xf32>
    %c0_41 = arith.constant 0 : index
    %c0_42 = arith.constant 0 : index
    %172 = vector.load %arg3[%c0_41, %c0_42] : memref<8x128xf32, #tpu.memory_space<vmem>>, vector<8x128xf32>
    %cst_43 = arith.constant dense<0.000000e+00> : vector<8x128xf32>
    %173 = tpu.matmul %171, %172, %cst_43 {dimension_numbers = #tpu.dot_dimension_numbers<[1], [0], [0], [1], [0, 0, 1, 1], [], []>} : vector<8x8xf32>, vector<8x128xf32>, vector<8x128xf32> -> vector<8x128xf32>
    %c0_44 = arith.constant 0 : index
    %c0_45 = arith.constant 0 : index
    %174 = vector.load %arg4[%c0_44, %c0_45] : memref<1x128xf32, #tpu.memory_space<vmem>>, vector<1x128xf32>
    %175 = vector.broadcast %174 : vector<1x128xf32> to vector<8x128xf32>
    %176 = arith.addf %173, %175 : vector<8x128xf32>
    %c0_46 = arith.constant 0 : index
    %c0_47 = arith.constant 0 : index
    %177 = vector.load %arg5[%c0_46, %c0_47] : memref<8x128xf32, #tpu.memory_space<vmem>>, vector<8x128xf32>
    tpu.vector_store %arg5[%c0_46, %c0_47], %176 {strides = array<i32>} : memref<8x128xf32, #tpu.memory_space<vmem>>, vector<8x128xf32>,
    return
  }
}

</mosaic_0001>

<llo_original>
// kernel: lstm_forward.1
$region0: #{lstm_forward.1}
  #allocation0 [shape = 'u32[]', space=smem, size = 0x4, offset = 0x4, fixed_abs, tag = 'smem constant byte address 0x4 - core index']
  #allocation1 [shape = 'u32[72,128]{1,0:T(1,128)}', space=vmem, size = 0x9000, scoped, tag = 'internal scratch']
  %s0 = inlined_call_operand.vmem [shape: s32[64,1], index: 0, kind: input, shape index: {}]
  %s1 = inlined_call_operand.vmem [shape: f32[128,32], index: 1, kind: input, shape index: {}]
  %s2 = inlined_call_operand.vmem [shape: f32[8,32], index: 2, kind: input, shape index: {}]
  %s3 = inlined_call_operand.vmem [shape: f32[8,128], index: 3, kind: input, shape index: {}]
  %s4 = inlined_call_operand.vmem [shape: f32[1,128], index: 4, kind: input, shape index: {}]
  %s5 = inlined_call_operand.vmem [shape: f32[8,128], index: 5, kind: output, shape index: {}]
  %s6 = sld [smem:[#allocation0]]
  $region30: #{lstm_forward.1} parent=0
    _
  %s8 = ssub.s32 1, %s6
  %s9 = scalar_select 0, %s8, %s6
  // Predicated region
  $region2: #{lstm_forward.1} parent=0 // pred_check
    _
  $region3: #{lstm_forward.1} parent=0 // pred_check_branch
    %11 = sbr.rel (0) target = $region5
  $region4: #{lstm_forward.1} parent=0 // pred_region
    _
  $region5: #{lstm_forward.1} parent=0 // pred_fallthru
    _
  // Predicated region
  $region6: #{lstm_forward.1} parent=0 // pred_check
    _
  $region7: #{lstm_forward.1} parent=0 // pred_check_branch
    %13 = sbr.rel (0) target = $region9
  $region8: #{lstm_forward.1} parent=0 // pred_region
    _
  $region9: #{lstm_forward.1} parent=0 // pred_fallthru
    _
  // Predicated region
  $region10: #{lstm_forward.1} parent=0 // pred_check
    _
  $region11: #{lstm_forward.1} parent=0 // pred_check_branch
    %15 = sbr.rel (0) target = $region13
  $region12: #{lstm_forward.1} parent=0 // pred_region
    _
  $region13: #{lstm_forward.1} parent=0 // pred_fallthru
    _
  // Predicated region
  $region14: #{lstm_forward.1} parent=0 // pred_check
    _
  $region15: #{lstm_forward.1} parent=0 // pred_check_branch
    %17 = sbr.rel (0) target = $region17
  $region16: #{lstm_forward.1} parent=0 // pred_region
    _
  $region17: #{lstm_forward.1} parent=0 // pred_fallthru
    _
  // Predicated region
  $region18: #{lstm_forward.1} parent=0 // pred_check
    _
  $region19: #{lstm_forward.1} parent=0 // pred_check_branch
    %19 = sbr.rel (0) target = $region21
  $region20: #{lstm_forward.1} parent=0 // pred_region
    _
  $region21: #{lstm_forward.1} parent=0 // pred_fallthru
    _
  %v20 = vld [vmem:[%s0] sm:$0xff]
  %v21 = vld [vmem:[%s0 + $0x8] sm:$0xff]
  %v22 = vld [vmem:[%s0 + $0x10] sm:$0xff]
  %v23 = vld [vmem:[%s0 + $0x18] sm:$0xff]
  %v24 = vld [vmem:[%s0 + $0x20] sm:$0xff]
  %v25 = vld [vmem:[%s0 + $0x28] sm:$0xff]
  %v26 = vld [vmem:[%s0 + $0x30] sm:$0xff]
  %v27 = vld [vmem:[%s0 + $0x38] sm:$0xff]
  %v28 = vlaneseq
  %v29 = vand.u32 %v28, 127
  %30 = vset.pattern.permute.xlu0 0
  %31 = vperm.xlu0 %30, %v20
  %v32 = vpop.permute.xlu0 %31
  %33 = vset.pattern.permute.xlu0 0
  %34 = vperm.xlu0 %33, %v21
  %v35 = vpop.permute.xlu0 %34
  %36 = vset.pattern.permute.xlu0 0
  %37 = vperm.xlu0 %36, %v22
  %v38 = vpop.permute.xlu0 %37
  %39 = vset.pattern.permute.xlu0 0
  %40 = vperm.xlu0 %39, %v23
  %v41 = vpop.permute.xlu0 %40
  %42 = vset.pattern.permute.xlu0 0
  %43 = vperm.xlu0 %42, %v24
  %v44 = vpop.permute.xlu0 %43
  %45 = vset.pattern.permute.xlu0 0
  %46 = vperm.xlu0 %45, %v25
  %v47 = vpop.permute.xlu0 %46
  %48 = vset.pattern.permute.xlu0 0
  %49 = vperm.xlu0 %48, %v26
  %v50 = vpop.permute.xlu0 %49
  %51 = vset.pattern.permute.xlu0 0
  %52 = vperm.xlu0 %51, %v27
  %v53 = vpop.permute.xlu0 %52
  %vm54 = vcmp.eq.s32.totalorder %v29, %v32
  %vm55 = vcmp.eq.s32.totalorder %v29, %v35
  %vm56 = vcmp.eq.s32.totalorder %v29, %v38
  %vm57 = vcmp.eq.s32.totalorder %v29, %v41
  %vm58 = vcmp.eq.s32.totalorder %v29, %v44
  %vm59 = vcmp.eq.s32.totalorder %v29, %v47
  %vm60 = vcmp.eq.s32.totalorder %v29, %v50
  %vm61 = vcmp.eq.s32.totalorder %v29, %v53
  %v62 = vsel %vm54, 1.0, 0.0
  %v63 = vsel %vm55, 1.0, 0.0
  %v64 = vsel %vm56, 1.0, 0.0
  %v65 = vsel %vm57, 1.0, 0.0
  %v66 = vsel %vm58, 1.0, 0.0
  %v67 = vsel %vm59, 1.0, 0.0
  %v68 = vsel %vm60, 1.0, 0.0
  %v69 = vsel %vm61, 1.0, 0.0
  %v70 = vld [vmem:[%s1] sm:$0xff]
  %v71 = vld [vmem:[%s1 + $0x8] sm:$0xff]
  %v72 = vld [vmem:[%s1 + $0x10] sm:$0xff]
  %v73 = vld [vmem:[%s1 + $0x18] sm:$0xff]
  %v74 = vld [vmem:[%s1 + $0x20] sm:$0xff]
  %v75 = vld [vmem:[%s1 + $0x28] sm:$0xff]
  %v76 = vld [vmem:[%s1 + $0x30] sm:$0xff]
  %v77 = vld [vmem:[%s1 + $0x38] sm:$0xff]
  %v78 = vld [vmem:[%s1 + $0x40] sm:$0xff]
  %v79 = vld [vmem:[%s1 + $0x48] sm:$0xff]
  %v80 = vld [vmem:[%s1 + $0x50] sm:$0xff]
  %v81 = vld [vmem:[%s1 + $0x58] sm:$0xff]
  %v82 = vld [vmem:[%s1 + $0x60] sm:$0xff]
  %v83 = vld [vmem:[%s1 + $0x68] sm:$0xff]
  %v84 = vld [vmem:[%s1 + $0x70] sm:$0xff]
  %v85 = vld [vmem:[%s1 + $0x78] sm:$0xff]
  %86 = vmatpush.msra.mxu0 %v85
  %87 = vmatpush.msra.mxu0 %v84
  %88 = vmatpush.msra.mxu0 %v83
  %89 = vmatpush.msra.mxu0 %v82
  %90 = vmatpush.msra.mxu0 %v81
  %91 = vmatpush.msra.mxu0 %v80
  %92 = vmatpush.msra.mxu0 %v79
  %93 = vmatpush.msra.mxu0 %v78
  %94 = vmatpush.msra.mxu0 %v77
  %95 = vmatpush.msra.mxu0 %v76
  %96 = vmatpush.msra.mxu0 %v75
  %97 = vmatpush.msra.mxu0 %v74
  %98 = vmatpush.msra.mxu0 %v73
  %99 = vmatpush.msra.mxu0 %v72
  %100 = vmatpush.msra.mxu0 %v71
  %101 = vmatpush.msra.mxu0 %v70
  %102 = vmatmul.f32.gmra.mxu0 %v62
  %v103 = vpop.f32.mrf.mxu0
  %v104 = vadd.f32 0.0, %v103
  %105 = vmatmul.f32.gmra.mxu0 %v63
  %v106 = vpop.f32.mrf.mxu0
  %v107 = vadd.f32 0.0, %v106
  %108 = vmatmul.f32.gmra.mxu0 %v64
  %v109 = vpop.f32.mrf.mxu0
  %v110 = vadd.f32 0.0, %v109
  %111 = vmatmul.f32.gmra.mxu0 %v65
  %v112 = vpop.f32.mrf.mxu0
  %v113 = vadd.f32 0.0, %v112
  %114 = vmatmul.f32.gmra.mxu0 %v66
  %v115 = vpop.f32.mrf.mxu0
  %v116 = vadd.f32 0.0, %v115
  %117 = vmatmul.f32.gmra.mxu0 %v67
  %v118 = vpop.f32.mrf.mxu0
  %v119 = vadd.f32 0.0, %v118
  %120 = vmatmul.f32.gmra.mxu0 %v68
  %v121 = vpop.f32.mrf.mxu0
  %v122 = vadd.f32 0.0, %v121
  %123 = vmatmul.f32.gmra.mxu0 %v69
  %v124 = vpop.f32.mrf.mxu0
  %v125 = vadd.f32 0.0, %v124
  %126 = vdwg.mxu0
  %v127 = vld [vmem:[%s2] sm:$0xff]
  %vm128 = vcmask 64512
  %v130 = vsel %vm128, 0.0, 0
  %132 = vmatpush.msra.mxu0 0.0
  %133 = vmatpush.msra.mxu0 0.0
  %134 = vmatpush.msra.mxu0 0.0
  %135 = vmatpush.msra.mxu0 0.0
  %136 = vmatpush.msra.mxu0 0.0
  %137 = vmatpush.msra.mxu0 0.0
  %138 = vmatpush.msra.mxu0 0.0
  %139 = vmatpush.msra.mxu0 0.0
  %140 = vmatpush.msra.mxu0 0.0
  %141 = vmatpush.msra.mxu0 0.0
  %142 = vmatpush.msra.mxu0 0.0
  %143 = vmatpush.msra.mxu0 0.0
  %144 = vmatpush.msra.mxu0 0.0
  %145 = vmatpush.msra.mxu0 0.0
  %146 = vmatpush.msra.mxu0 0.0
  %147 = vmatpush.msra.mxu0 %v127
  %148 = vmatmul.f32.gmra.mxu0 %v130
  %v149 = vpop.f32.mrf.mxu0
  %v150 = vadd.f32 0.0, %v149
  %151 = vdwg.mxu0
  %v152 = vadd.f32 %v104, %v150
  %v153 = vmul.f32 %v152, 0.5
  %v154 = vtanh.pop %v153
  %v155 = vadd.f32 %v154, 1.0
  %v156 = vmul.f32 %v155, 0.5
  %v157 = vtanh.pop %v152
  %v158 = vmul.f32 %v156, 0.0
  %160 = vrot.lane.b32.xlu0 %v157, 112
  %v161 = vpop.permute.xlu0 %160
  %v163 = vmul.f32 %v156, %v161
  %165 = vrot.lane.b32.xlu0 %v163, 8
  %v166 = vpop.permute.xlu0 %165
  %v168 = vadd.f32 %v158, %v166
  %v169 = vtanh.pop %v168
  %171 = vrot.lane.b32.xlu0 %v169, 16
  %v172 = vpop.permute.xlu0 %171
  %v174 = vmul.f32 %v156, %v172
  %176 = vrot.lane.b32.xlu0 %v174, 104
  %v177 = vpop.permute.xlu0 %176
  %v178 = vsel %vm128, %v177, 0
  %180 = vmatpush.msra.mxu0 0.0
  %181 = vmatpush.msra.mxu0 0.0
  %182 = vmatpush.msra.mxu0 0.0
  %183 = vmatpush.msra.mxu0 0.0
  %184 = vmatpush.msra.mxu0 0.0
  %185 = vmatpush.msra.mxu0 0.0
  %186 = vmatpush.msra.mxu0 0.0
  %187 = vmatpush.msra.mxu0 0.0
  %188 = vmatpush.msra.mxu0 0.0
  %189 = vmatpush.msra.mxu0 0.0
  %190 = vmatpush.msra.mxu0 0.0
  %191 = vmatpush.msra.mxu0 0.0
  %192 = vmatpush.msra.mxu0 0.0
  %193 = vmatpush.msra.mxu0 0.0
  %194 = vmatpush.msra.mxu0 0.0
  %195 = vmatpush.msra.mxu0 %v127
  %196 = vmatmul.f32.gmra.mxu0 %v178
  %v197 = vpop.f32.mrf.mxu0
  %v198 = vadd.f32 0.0, %v197
  %199 = vdwg.mxu0
  %v200 = vadd.f32 %v107, %v198
  %v201 = vmul.f32 %v200, 0.5
  %v202 = vtanh.pop %v201
  %v203 = vadd.f32 %v202, 1.0
  %v204 = vmul.f32 %v203, 0.5
  %v205 = vtanh.pop %v200
  %v206 = vmul.f32 %v204, %v168
  %208 = vrot.lane.b32.xlu0 %v205, 112
  %v209 = vpop.permute.xlu0 %208
  %v211 = vmul.f32 %v204, %v209
  %213 = vrot.lane.b32.xlu0 %v211, 8
  %v214 = vpop.permute.xlu0 %213
  %v216 = vadd.f32 %v206, %v214
  %v217 = vtanh.pop %v216
  %219 = vrot.lane.b32.xlu0 %v217, 16
  %v220 = vpop.permute.xlu0 %219
  %v222 = vmul.f32 %v204, %v220
  %224 = vrot.lane.b32.xlu0 %v222, 104
  %v225 = vpop.permute.xlu0 %224
  %v226 = vsel %vm128, %v225, 0
  %228 = vmatpush.msra.mxu0 0.0
  %229 = vmatpush.msra.mxu0 0.0
  %230 = vmatpush.msra.mxu0 0.0
  %231 = vmatpush.msra.mxu0 0.0
  %232 = vmatpush.msra.mxu0 0.0
  %233 = vmatpush.msra.mxu0 0.0
  %234 = vmatpush.msra.mxu0 0.0
  %235 = vmatpush.msra.mxu0 0.0
  %236 = vmatpush.msra.mxu0 0.0
  %237 = vmatpush.msra.mxu0 0.0
  %238 = vmatpush.msra.mxu0 0.0
  %239 = vmatpush.msra.mxu0 0.0
  %240 = vmatpush.msra.mxu0 0.0
  %241 = vmatpush.msra.mxu0 0.0
  %242 = vmatpush.msra.mxu0 0.0
  %243 = vmatpush.msra.mxu0 %v127
  %244 = vmatmul.f32.gmra.mxu0 %v226
  %v245 = vpop.f32.mrf.mxu0
  %v246 = vadd.f32 0.0, %v245
  %247 = vdwg.mxu0
  %v248 = vadd.f32 %v110, %v246
  %v249 = vmul.f32 %v248, 0.5
  %v250 = vtanh.pop %v249
  %v251 = vadd.f32 %v250, 1.0
  %v252 = vmul.f32 %v251, 0.5
  %v253 = vtanh.pop %v248
  %v254 = vmul.f32 %v252, %v216
  %256 = vrot.lane.b32.xlu0 %v253, 112
  %v257 = vpop.permute.xlu0 %256
  %v259 = vmul.f32 %v252, %v257
  %261 = vrot.lane.b32.xlu0 %v259, 8
  %v262 = vpop.permute.xlu0 %261
  %v264 = vadd.f32 %v254, %v262
  %v265 = vtanh.pop %v264
  %267 = vrot.lane.b32.xlu0 %v265, 16
  %v268 = vpop.permute.xlu0 %267
  %v270 = vmul.f32 %v252, %v268
  %272 = vrot.lane.b32.xlu0 %v270, 104
  %v273 = vpop.permute.xlu0 %272
  %v274 = vsel %vm128, %v273, 0
  %276 = vmatpush.msra.mxu0 0.0
  %277 = vmatpush.msra.mxu0 0.0
  %278 = vmatpush.msra.mxu0 0.0
  %279 = vmatpush.msra.mxu0 0.0
  %280 = vmatpush.msra.mxu0 0.0
  %281 = vmatpush.msra.mxu0 0.0
  %282 = vmatpush.msra.mxu0 0.0
  %283 = vmatpush.msra.mxu0 0.0
  %284 = vmatpush.msra.mxu0 0.0
  %285 = vmatpush.msra.mxu0 0.0
  %286 = vmatpush.msra.mxu0 0.0
  %287 = vmatpush.msra.mxu0 0.0
  %288 = vmatpush.msra.mxu0 0.0
  %289 = vmatpush.msra.mxu0 0.0
  %290 = vmatpush.msra.mxu0 0.0
  %291 = vmatpush.msra.mxu0 %v127
  %292 = vmatmul.f32.gmra.mxu0 %v274
  %v293 = vpop.f32.mrf.mxu0
  %v294 = vadd.f32 0.0, %v293
  %295 = vdwg.mxu0
  %v296 = vadd.f32 %v113, %v294
  %v297 = vmul.f32 %v296, 0.5
  %v298 = vtanh.pop %v297
  %v299 = vadd.f32 %v298, 1.0
  %v300 = vmul.f32 %v299, 0.5
  %v301 = vtanh.pop %v296
  %v302 = vmul.f32 %v300, %v264
  %304 = vrot.lane.b32.xlu0 %v301, 112
  %v305 = vpop.permute.xlu0 %304
  %v307 = vmul.f32 %v300, %v305
  %309 = vrot.lane.b32.xlu0 %v307, 8
  %v310 = vpop.permute.xlu0 %309
  %v312 = vadd.f32 %v302, %v310
  %v313 = vtanh.pop %v312
  %315 = vrot.lane.b32.xlu0 %v313, 16
  %v316 = vpop.permute.xlu0 %315
  %v318 = vmul.f32 %v300, %v316
  %320 = vrot.lane.b32.xlu0 %v318, 104
  %v321 = vpop.permute.xlu0 %320
  %v322 = vsel %vm128, %v321, 0
  %324 = vmatpush.msra.mxu0 0.0
  %325 = vmatpush.msra.mxu0 0.0
  %326 = vmatpush.msra.mxu0 0.0
  %327 = vmatpush.msra.mxu0 0.0
  %328 = vmatpush.msra.mxu0 0.0
  %329 = vmatpush.msra.mxu0 0.0
  %330 = vmatpush.msra.mxu0 0.0
  %331 = vmatpush.msra.mxu0 0.0
  %332 = vmatpush.msra.mxu0 0.0
  %333 = vmatpush.msra.mxu0 0.0
  %334 = vmatpush.msra.mxu0 0.0
  %335 = vmatpush.msra.mxu0 0.0
  %336 = vmatpush.msra.mxu0 0.0
  %337 = vmatpush.msra.mxu0 0.0
  %338 = vmatpush.msra.mxu0 0.0
  %339 = vmatpush.msra.mxu0 %v127
  %340 = vmatmul.f32.gmra.mxu0 %v322
  %v341 = vpop.f32.mrf.mxu0
  %v342 = vadd.f32 0.0, %v341
  %343 = vdwg.mxu0
  %v344 = vadd.f32 %v116, %v342
  %v345 = vmul.f32 %v344, 0.5
  %v346 = vtanh.pop %v345
  %v347 = vadd.f32 %v346, 1.0
  %v348 = vmul.f32 %v347, 0.5
  %v349 = vtanh.pop %v344
  %v350 = vmul.f32 %v348, %v312
  %352 = vrot.lane.b32.xlu0 %v349, 112
  %v353 = vpop.permute.xlu0 %352
  %v355 = vmul.f32 %v348, %v353
  %357 = vrot.lane.b32.xlu0 %v355, 8
  %v358 = vpop.permute.xlu0 %357
  %v360 = vadd.f32 %v350, %v358
  %v361 = vtanh.pop %v360
  %363 = vrot.lane.b32.xlu0 %v361, 16
  %v364 = vpop.permute.xlu0 %363
  %v366 = vmul.f32 %v348, %v364
  %368 = vrot.lane.b32.xlu0 %v366, 104
  %v369 = vpop.permute.xlu0 %368
  %v370 = vsel %vm128, %v369, 0
  %372 = vmatpush.msra.mxu0 0.0
  %373 = vmatpush.msra.mxu0 0.0
  %374 = vmatpush.msra.mxu0 0.0
  %375 = vmatpush.msra.mxu0 0.0
  %376 = vmatpush.msra.mxu0 0.0
  %377 = vmatpush.msra.mxu0 0.0
  %378 = vmatpush.msra.mxu0 0.0
  %379 = vmatpush.msra.mxu0 0.0
  %380 = vmatpush.msra.mxu0 0.0
  %381 = vmatpush.msra.mxu0 0.0
  %382 = vmatpush.msra.mxu0 0.0
  %383 = vmatpush.msra.mxu0 0.0
  %384 = vmatpush.msra.mxu0 0.0
  %385 = vmatpush.msra.mxu0 0.0
  %386 = vmatpush.msra.mxu0 0.0
  %387 = vmatpush.msra.mxu0 %v127
  %388 = vmatmul.f32.gmra.mxu0 %v370
  %v389 = vpop.f32.mrf.mxu0
  %v390 = vadd.f32 0.0, %v389
  %391 = vdwg.mxu0
  %v392 = vadd.f32 %v119, %v390
  %v393 = vmul.f32 %v392, 0.5
  %v394 = vtanh.pop %v393
  %v395 = vadd.f32 %v394, 1.0
  %v396 = vmul.f32 %v395, 0.5
  %v397 = vtanh.pop %v392
  %v398 = vmul.f32 %v396, %v360
  %400 = vrot.lane.b32.xlu0 %v397, 112
  %v401 = vpop.permute.xlu0 %400
  %v403 = vmul.f32 %v396, %v401
  %405 = vrot.lane.b32.xlu0 %v403, 8
  %v406 = vpop.permute.xlu0 %405
  %v408 = vadd.f32 %v398, %v406
  %v409 = vtanh.pop %v408
  %411 = vrot.lane.b32.xlu0 %v409, 16
  %v412 = vpop.permute.xlu0 %411
  %v414 = vmul.f32 %v396, %v412
  %416 = vrot.lane.b32.xlu0 %v414, 104
  %v417 = vpop.permute.xlu0 %416
  %v418 = vsel %vm128, %v417, 0
  %420 = vmatpush.msra.mxu0 0.0
  %421 = vmatpush.msra.mxu0 0.0
  %422 = vmatpush.msra.mxu0 0.0
  %423 = vmatpush.msra.mxu0 0.0
  %424 = vmatpush.msra.mxu0 0.0
  %425 = vmatpush.msra.mxu0 0.0
  %426 = vmatpush.msra.mxu0 0.0
  %427 = vmatpush.msra.mxu0 0.0
  %428 = vmatpush.msra.mxu0 0.0
  %429 = vmatpush.msra.mxu0 0.0
  %430 = vmatpush.msra.mxu0 0.0
  %431 = vmatpush.msra.mxu0 0.0
  %432 = vmatpush.msra.mxu0 0.0
  %433 = vmatpush.msra.mxu0 0.0
  %434 = vmatpush.msra.mxu0 0.0
  %435 = vmatpush.msra.mxu0 %v127
  %436 = vmatmul.f32.gmra.mxu0 %v418
  %v437 = vpop.f32.mrf.mxu0
  %v438 = vadd.f32 0.0, %v437
  %439 = vdwg.mxu0
  %v440 = vadd.f32 %v122, %v438
  %v441 = vmul.f32 %v440, 0.5
  %v442 = vtanh.pop %v441
  %v443 = vadd.f32 %v442, 1.0
  %v444 = vmul.f32 %v443, 0.5
  %v445 = vtanh.pop %v440
  %v446 = vmul.f32 %v444, %v408
  %448 = vrot.lane.b32.xlu0 %v445, 112
  %v449 = vpop.permute.xlu0 %448
  %v451 = vmul.f32 %v444, %v449
  %453 = vrot.lane.b32.xlu0 %v451, 8
  %v454 = vpop.permute.xlu0 %453
  %v456 = vadd.f32 %v446, %v454
  %v457 = vtanh.pop %v456
  %459 = vrot.lane.b32.xlu0 %v457, 16
  %v460 = vpop.permute.xlu0 %459
  %v462 = vmul.f32 %v444, %v460
  %464 = vrot.lane.b32.xlu0 %v462, 104
  %v465 = vpop.permute.xlu0 %464
  %v466 = vsel %vm128, %v465, 0
  %468 = vmatpush.msra.mxu0 0.0
  %469 = vmatpush.msra.mxu0 0.0
  %470 = vmatpush.msra.mxu0 0.0
  %471 = vmatpush.msra.mxu0 0.0
  %472 = vmatpush.msra.mxu0 0.0
  %473 = vmatpush.msra.mxu0 0.0
  %474 = vmatpush.msra.mxu0 0.0
  %475 = vmatpush.msra.mxu0 0.0
  %476 = vmatpush.msra.mxu0 0.0
  %477 = vmatpush.msra.mxu0 0.0
  %478 = vmatpush.msra.mxu0 0.0
  %479 = vmatpush.msra.mxu0 0.0
  %480 = vmatpush.msra.mxu0 0.0
  %481 = vmatpush.msra.mxu0 0.0
  %482 = vmatpush.msra.mxu0 0.0
  %483 = vmatpush.msra.mxu0 %v127
  %484 = vmatmul.f32.gmra.mxu0 %v466
  %v485 = vpop.f32.mrf.mxu0
  %v486 = vadd.f32 0.0, %v485
  %487 = vdwg.mxu0
  %v488 = vadd.f32 %v125, %v486
  %v489 = vmul.f32 %v488, 0.5
  %v490 = vtanh.pop %v489
  %v491 = vadd.f32 %v490, 1.0
  %v492 = vmul.f32 %v491, 0.5
  %v493 = vtanh.pop %v488
  %v494 = vmul.f32 %v492, %v456
  %496 = vrot.lane.b32.xlu0 %v493, 112
  %v497 = vpop.permute.xlu0 %496
  %v499 = vmul.f32 %v492, %v497
  %501 = vrot.lane.b32.xlu0 %v499, 8
  %v502 = vpop.permute.xlu0 %501
  %v504 = vadd.f32 %v494, %v502
  %v505 = vtanh.pop %v504
  %507 = vrot.lane.b32.xlu0 %v505, 16
  %v508 = vpop.permute.xlu0 %507
  %v510 = vmul.f32 %v492, %v508
  %v511 = vld [vmem:[%s3] sm:$0xff]
  %v512 = vld [vmem:[%s4] sm:$0x1]
  %v514 = vperm.slane %v512, 0
  %517 = vrot.lane.b32.xlu0 %v510, 104
  %v518 = vpop.permute.xlu0 %517
  %v519 = vsel %vm128, %v518, 0
  %521 = vmatpush.msra.mxu0 0.0
  %522 = vmatpush.msra.mxu0 0.0
  %523 = vmatpush.msra.mxu0 0.0
  %524 = vmatpush.msra.mxu0 0.0
  %525 = vmatpush.msra.mxu0 0.0
  %526 = vmatpush.msra.mxu0 0.0
  %527 = vmatpush.msra.mxu0 0.0
  %528 = vmatpush.msra.mxu0 0.0
  %529 = vmatpush.msra.mxu0 0.0
  %530 = vmatpush.msra.mxu0 0.0
  %531 = vmatpush.msra.mxu0 0.0
  %532 = vmatpush.msra.mxu0 0.0
  %533 = vmatpush.msra.mxu0 0.0
  %534 = vmatpush.msra.mxu0 0.0
  %535 = vmatpush.msra.mxu0 0.0
  %536 = vmatpush.msra.mxu0 %v511
  %537 = vmatmul.f32.gmra.mxu0 %v519
  %v538 = vpop.f32.mrf.mxu0
  %v539 = vadd.f32 %v514, %v538
  %540 = vdwg.mxu0
  %541 = vst [vmem:[%s5] sm:$0xff] %v539
  // Predicated region
  $region22: #{lstm_forward.1} parent=0 // pred_check
    _
  $region23: #{lstm_forward.1} parent=0 // pred_check_branch
    %543 = sbr.rel (0) target = $region25
  $region24: #{lstm_forward.1} parent=0 // pred_region
    _
  $region25: #{lstm_forward.1} parent=0 // pred_fallthru
    _
  // Predicated region
  $region26: #{lstm_forward.1} parent=0 // pred_check
    _
  $region27: #{lstm_forward.1} parent=0 // pred_check_branch
    %545 = sbr.rel (0) target = $region29
  $region28: #{lstm_forward.1} parent=0 // pred_region
    _
  $region29: #{lstm_forward.1} parent=0 // pred_fallthru
    _

</llo_original>
